<compile_context>
chip_gen: v7x
topology: tpu7x:2x2x1
jax: 0.10.0
libtpu: 0.0.40
codegen_flags: <defaults>
</compile_context>

<pallas_src>
import jax
import jax.numpy as jnp
from jax.experimental import pallas as pl
from jax.experimental.pallas import tpu as pltpu

LAMBD = 0.5            # torch.nn.Hardshrink() default lambda
LANE = 128             # vreg lane width
TILE_ROWS = 4096       # 4096 x 128 f32 = 2 MiB per buffer
MIN_BLOCKS = 4         # aim for >=4 grid steps so v7x megacore has >=2 per TC
SMALL_N_FUSED = 65536  # below this, plain fused XLA beats a pallas_call launch


def _round_up(a, m):
    return ((a + m - 1) // m) * m


def _hardshrink(v):
    # Hardshrink: v if |v| > lambd else 0 (strict inequality, like PyTorch).
    # NaN inputs map to 0 (comparison is False), matching the piecewise definition.
    return jnp.where(jnp.abs(v) > jnp.asarray(LAMBD, v.dtype), v, jnp.zeros_like(v))


def simplenet_kernel(w_ref, x_ref, o_ref):
    # w_ref: SMEM (3,) f32 weights for fc1/fc2/fc3 (scalar-prefetch arg).
    # x_ref/o_ref: VMEM (tile_rows, 128) lane-dense tiles.
    x = x_ref[...]
    # Scalar casts keep the elementwise chain in the input's native width.
    w0 = w_ref[0].astype(x.dtype)
    w1 = w_ref[1].astype(x.dtype)
    w2 = w_ref[2].astype(x.dtype)
    y = _hardshrink(x * w0)   # activation(fc1(x))
    y = _hardshrink(y * w1)   # activation(fc2(.))
    y = _hardshrink(y * w2)   # activation(fc3(.))
    o_ref[...] = y.astype(o_ref.dtype)


def _reference(x, weights):
    # Pure-JAX reference of the PyTorch forward (also the tiny-input fast path).
    w = weights.astype(x.dtype)
    y = x
    for i in range(3):
        y = y * w[i]
        y = _hardshrink(y)
    return y


def simple_net(x, weights):
    """SimpleNet forward. x: any shape (elementwise), weights: (3,) f32. Returns x.shape."""
    orig_shape = x.shape
    n = x.size

    # Tiny inputs: fused XLA elementwise op; pallas_call dispatch would dominate.
    if n < SMALL_N_FUSED:
        return _reference(x, weights)

    flat = x.reshape(-1)
    rows = pl.cdiv(n, LANE)
    pad = rows * LANE - n
    if pad:
        # Only pad to the 128-lane boundary (<= 127 elements).
        flat = jnp.pad(flat, (0, pad))
    x2d = flat.reshape(rows, LANE)

    # Tile sizing: big tiles for streaming efficiency, but >= MIN_BLOCKS grid
    # steps when possible so both v7x TensorCores get work.
    tile_rows = max(8, min(TILE_ROWS, _round_up(pl.cdiv(rows, MIN_BLOCKS), 8)))
    grid = pl.cdiv(rows, tile_rows)   # ragged last block handled by Pallas masking

    itemsize = jnp.dtype(x.dtype).itemsize
    out2d = pl.pallas_call(
        simplenet_kernel,
        out_shape=jax.ShapeDtypeStruct((rows, LANE), x.dtype),
        grid_spec=pltpu.PrefetchScalarGridSpec(
            num_scalar_prefetch=1,                 # weights -> SMEM, passed first
            grid=(grid,),
            in_specs=[pl.BlockSpec((tile_rows, LANE), lambda i, w: (i, 0))],
            out_specs=pl.BlockSpec((tile_rows, LANE), lambda i, w: (i, 0)),
        ),
        compiler_params=pltpu.CompilerParams(
            dimension_semantics=("parallel",)),    # megacore sharding on v7x
        cost_estimate=pl.CostEstimate(
            flops=12 * n, transcendentals=0, bytes_accessed=2 * n * itemsize),
    )(weights, x2d)

    if pad:
        return out2d.reshape(-1)[:n].reshape(orig_shape)
    return out2d.reshape(orig_shape)


if __name__ == "__main__":
    key0, key1 = jax.random.split(jax.random.PRNGKey(0))

    # Deterministic parameter init matching the module: all three Linear
    # weights are filled with 1.0 (shape (1,1) each -> stored here as scalars).
    weights = jnp.ones((3,), dtype=jnp.float32)

    # Small case matching the module's Linear(1, 1) signature: x is (batch, 1).
    # Takes the fused-XLA fast path.
    B = 8
    x_small = jax.random.normal(key0, (B, 1), dtype=jnp.float32)
    out_small = simple_net(x_small, weights)
    jax.block_until_ready(out_small)
    assert out_small.shape == x_small.shape
    assert jnp.allclose(out_small, _reference(x_small, weights), atol=1e-6)

    # Moderate case exercising the tiled Pallas path: lane-boundary pad,
    # multi-block grid, and a ragged (masked) last block.
    B2 = 70_000   # -> 547 rows of 128 lanes, tile_rows=144, grid=(4,)
    x_big = jax.random.normal(key1, (B2, 1), dtype=jnp.float32)
    out_big = simple_net(x_big, weights)
    jax.block_until_ready(out_big)
    assert out_big.shape == x_big.shape
    assert jnp.allclose(out_big, _reference(x_big, weights), atol=1e-6)

    print("KERNEL_OK")
</pallas_src>

<mosaic_0001>
module attributes {stable_mosaic.version = 11 : i64} {
  func.func @simplenet_kernel(%arg0: i32, %arg1: memref<3xf32, #tpu.memory_space<smem>>, %arg2: memref<144x128xf32, #tpu.memory_space<vmem>>, %arg3: memref<144x128xf32, #tpu.memory_space<vmem>>) attributes {dimension_semantics = [#tpu.dimension_semantics<parallel>], iteration_bounds = array<i64: 4>, scalar_prefetch = 1 : i64, scratch_operands = 0 : i64, tpu.core_type = #tpu.core_type<tc>, window_params = [{transform_indices = @transform_0, window_bounds = array<i64: 144, 128>}, {transform_indices = @transform_1, window_bounds = array<i64: 144, 128>}]} {
    %c0 = arith.constant 0 : index
    %c0_0 = arith.constant 0 : index
    %0 = vector.load %arg2[%c0, %c0_0] : memref<144x128xf32, #tpu.memory_space<vmem>>, vector<144x128xf32>
    %c0_1 = arith.constant 0 : index
    %1 = memref.load %arg1[%c0_1] : memref<3xf32, #tpu.memory_space<smem>>
    %c1 = arith.constant 1 : index
    %2 = memref.load %arg1[%c1] : memref<3xf32, #tpu.memory_space<smem>>
    %c2 = arith.constant 2 : index
    %3 = memref.load %arg1[%c2] : memref<3xf32, #tpu.memory_space<smem>>
    %4 = vector.broadcast %1 : f32 to vector<144x128xf32>
    %5 = arith.mulf %0, %4 : vector<144x128xf32>
    %6 = math.absf %5 : vector<144x128xf32>
    %cst = arith.constant 5.000000e-01 : f32
    %7 = vector.broadcast %cst : f32 to vector<144x128xf32>
    %8 = arith.cmpf ogt, %6, %7 : vector<144x128xf32>
    %cst_2 = arith.constant 0.000000e+00 : f32
    %9 = vector.broadcast %cst_2 : f32 to vector<144x128xf32>
    %10 = arith.select %8, %5, %9 : vector<144x128xi1>, vector<144x128xf32>
    %11 = vector.broadcast %2 : f32 to vector<144x128xf32>
    %12 = arith.mulf %10, %11 : vector<144x128xf32>
    %13 = math.absf %12 : vector<144x128xf32>
    %cst_3 = arith.constant 5.000000e-01 : f32
    %14 = vector.broadcast %cst_3 : f32 to vector<144x128xf32>
    %15 = arith.cmpf ogt, %13, %14 : vector<144x128xf32>
    %cst_4 = arith.constant 0.000000e+00 : f32
    %16 = vector.broadcast %cst_4 : f32 to vector<144x128xf32>
    %17 = arith.select %15, %12, %16 : vector<144x128xi1>, vector<144x128xf32>
    %18 = vector.broadcast %3 : f32 to vector<144x128xf32>
    %19 = arith.mulf %17, %18 : vector<144x128xf32>
    %20 = math.absf %19 : vector<144x128xf32>
    %cst_5 = arith.constant 5.000000e-01 : f32
    %21 = vector.broadcast %cst_5 : f32 to vector<144x128xf32>
    %22 = arith.cmpf ogt, %20, %21 : vector<144x128xf32>
    %cst_6 = arith.constant 0.000000e+00 : f32
    %23 = vector.broadcast %cst_6 : f32 to vector<144x128xf32>
    %24 = arith.select %22, %19, %23 : vector<144x128xi1>, vector<144x128xf32>
    %c0_7 = arith.constant 0 : index
    %c0_8 = arith.constant 0 : index
    %25 = vector.load %arg3[%c0_7, %c0_8] : memref<144x128xf32, #tpu.memory_space<vmem>>, vector<144x128xf32>
    tpu.vector_store %arg3[%c0_7, %c0_8], %24 {strides = array<i32>} : memref<144x128xf32, #tpu.memory_space<vmem>>, vector<144x128xf32>,
    return
  }
  func.func @transform_0(%arg0: i32, %arg1: memref<3xf32, #tpu.memory_space<smem>>) -> (i32, i32) {
    %c0_i32 = arith.constant 0 : i32
    %c0_i32_0 = arith.constant 0 : i32
    return %arg0, %c0_i32 : i32, i32
  }
  func.func @transform_1(%arg0: i32, %arg1: memref<3xf32, #tpu.memory_space<smem>>) -> (i32, i32) {
    %c0_i32 = arith.constant 0 : i32
    %c0_i32_0 = arith.constant 0 : i32
    return %arg0, %c0_i32 : i32, i32
  }
}

</mosaic_0001>

<llo_original>
// kernel: tpu_custom_call.1
$region0: #{tpu_custom_call.1}
  #allocation0 [shape = 'u32[]', space=smem, size = 0x4, offset = 0x4, fixed_abs, tag = 'smem constant byte address 0x4 - core index']
  #allocation1 [shape = 'u32[144,128]{1,0:T(1,128)}', space=vmem, size = 0x12000, scoped, tag = 'internal scratch']
  #allocation2 [shape = 's32[1]{0}', space=sflag, size = 0x4, scoped, tag = 'scoped memory for tpu_custom_call.1']
  #allocation3 [shape = 'u8[512]{0}', space=smem, size = 0x200, scoped, tag = 'prefetched SMEM operand 0']
  %s0 = inlined_call_operand.hbm [shape: f32[3], index: 0, kind: input, shape index: {}]
  %s1 = inlined_call_operand.hbm [shape: f32[547,128], index: 1, kind: input, shape index: {}]
  %s2 = inlined_call_operand.hbm [shape: f32[547,128], index: 2, kind: output, shape index: {}]
  %s3 = sld [smem:[#allocation0]]
  $region41: #{tpu_custom_call.1} parent=0
    _
  %s5 = ssub.s32 1, %s3
  %s6 = scalar_select 0, %s5, %s3
  %8 = dma.hbm_to_smem %s0, 16, [#allocation3], [#allocation2]
  %9 = dma.done [#allocation2], 16
  %10 = sfence
  $region1: #{tpu_custom_call.1} parent=0
    #allocation4 [shape = 'u8[147456]{0}', space=vmem, size = 0x24000, scoped, tag = 'input window, operand 1']
    #allocation5 [shape = 's32[2]{0}', space=sflag, size = 0x8, scoped, tag = 'scoped memory for tpu_custom_call.1']
    #allocation6 [shape = 's32[2]{0}', space=sflag, size = 0x8, scoped, tag = 'scoped memory for tpu_custom_call.1']
    #allocation7 [shape = 'u8[147456]{0}', space=vmem, size = 0x24000, scoped, tag = 'output window, operand 0']
    %11 = vsyncpa [#allocation5], 0
    %s12 = scalar_lea.sflag [#allocation5], 1
    %13 = vsyncpa %s12, 0
    %14 = vsyncpa [#allocation6], 0
    %s15 = scalar_lea.sflag [#allocation6], 1
    %16 = vsyncpa %s15, 0
    loop: start=0, step=1, limit=6
    $region2: #{tpu_custom_call.1} parent=1 // loop_pre_header
      _
    $region3: #{tpu_custom_call.1} parent=1 // loop_header
      %s18 = sphi 0, %s22
      %p19 = scmp.ge.s32.totalorder %s18, 6
      %s28 = sphi 0, %s30
      %s31 = sphi 0, %s28
      %s32 = sphi 0, %s31
      %s48 = sphi 0, %s32
      %s54 = sphi 0, %s56
      %s57 = sphi 0, %s54
      %s58 = sphi 0, %s57
      %s74 = sphi 0, %s58
    $region4: #{tpu_custom_call.1} parent=1 // loop_header_branch
      %21 = sbr.rel (%p19) target = $region8
    $region5: #{tpu_custom_call.1} parent=1 // loop_body
      %s23 = ssub.s32 %s18, 1
      %s24 = ssub.s32 %s18, 2
      %s25 = sadd.s32 %s18, 1
      %s26 = ssub.s32 %s18, %s25
      %p27 = scmp.eq.s32.totalorder %s26, 0
      %s29 = sadd.s32 %s28, 1
      %s30 = scalar_select %p27, %s28, %s29
      %p33 = pneg %p27
      %p34 = scmp.eq.s32.totalorder %s18, 3
      %p35 = por %p33, %p34
      %p36 = scmp.ne.s32.totalorder %s28, %s31
      %p37 = scmp.eq.s32.totalorder %s18, 0
      %p38 = por %p36, %p37
      %p39 = scmp.ne.s32.totalorder %s28, %s31
      %p40 = scmp.eq.s32.totalorder %s23, 3
      %p41 = por %p39, %p40
      %p42 = scmp.ne.s32.totalorder %s31, %s32
      %p43 = scmp.eq.s32.totalorder %s23, 0
      %p44 = por %p42, %p43
      %p45 = scmp.ne.s32.totalorder %s31, %s32
      %p46 = scmp.eq.s32.totalorder %s24, 3
      %p47 = por %p45, %p46
      %p49 = scmp.ne.s32.totalorder %s32, %s48
      %p50 = scmp.eq.s32.totalorder %s24, 0
      %p51 = por %p49, %p50
      %s52 = ssub.s32 %s18, %s25
      %p53 = scmp.eq.s32.totalorder %s52, 0
      %s55 = sadd.s32 %s54, 1
      %s56 = scalar_select %p53, %s54, %s55
      %p59 = pneg %p53
      %p60 = scmp.eq.s32.totalorder %s18, 3
      %p61 = por %p59, %p60
      %p62 = scmp.ne.s32.totalorder %s54, %s57
      %p63 = scmp.eq.s32.totalorder %s18, 0
      %p64 = por %p62, %p63
      %p65 = scmp.ne.s32.totalorder %s54, %s57
      %p66 = scmp.eq.s32.totalorder %s23, 3
      %p67 = por %p65, %p66
      %p68 = scmp.ne.s32.totalorder %s57, %s58
      %p69 = scmp.eq.s32.totalorder %s23, 0
      %p70 = por %p68, %p69
      %p71 = scmp.ne.s32.totalorder %s57, %s58
      %p72 = scmp.eq.s32.totalorder %s24, 3
      %p73 = por %p71, %p72
      %p75 = scmp.ne.s32.totalorder %s58, %s74
      %p76 = scmp.eq.s32.totalorder %s24, 0
      %p77 = por %p75, %p76
      %p78 = scmp.le.s32.totalorder 1, %s18
      %p79 = scmp.lt.s32.totalorder %s18, 5
      %p80 = pnand %p78, %p79
      %p81 = pneg %p80
      // Predicated region
      $region9: #{tpu_custom_call.1} parent=5 // pred_check
        _
      $region10: #{tpu_custom_call.1} parent=5 // pred_check_branch
        %83 = sbr.rel (%p80) target = $region12
      $region11: #{tpu_custom_call.1} parent=5 // pred_region
        %s84 = ssub.s32 %s18, 1
      $region12: #{tpu_custom_call.1} parent=5 // pred_fallthru
        _
      %p85 = scmp.lt.s32.totalorder %s18, 4
      // Predicated region
      $region13: #{tpu_custom_call.1} parent=5 // pred_check
        %p86 = pneg %p85
      $region14: #{tpu_custom_call.1} parent=5 // pred_check_branch
        %88 = sbr.rel (%p86) target = $region16
      $region15: #{tpu_custom_call.1} parent=5 // pred_region
        // Predicated region
        $region17: #{tpu_custom_call.1} parent=15 // pred_check
          %p89 = pneg %p38
        $region18: #{tpu_custom_call.1} parent=15 // pred_check_branch
          %91 = sbr.rel (%p89) target = $region20
        $region19: #{tpu_custom_call.1} parent=15 // pred_region
          %s92 = sand.u32 %s28, 1
          %s93 = scalar_lea.sflag [#allocation5], %s92
          %s94 = sand.u32 %s28, 1
          %s95 = smul.addr %s94, 144
          %s96 = scalar_lea.vmem [#allocation4], %s95
          %s97 = smul.u32 18, %s18
          %s98 = ssub.s32 69, %s97
          %p99 = scmp.lt.s32.totalorder %s98, 18
          %s100 = scalar_select %p99, %s98, 18
          %s101 = smul.u32 128, %s100
          %s103 = ssub.s32 2304, %s101
          %104 = vsyncadd %s93, %s103
          %p105 = scmp.ne.s32.totalorder 0, %s101
          %s106 = smul.addr %s97, 128
          %s107 = scalar_lea.hbm %s1, %s106
          %s108 = smul.u32 8, %s100
          %s109 = sshll.u32 %s96, 4
          %s110 = int_to_ptr.vmem [resolvable:$true] %s109
          %s111 = sshll.u32 %s108, 4
          %115 = dma.hbm_to_vmem [thread:$0]  (%p105), %s107, %s111, %s110, %s93, 128, 128, 8
        $region20: #{tpu_custom_call.1} parent=15 // pred_fallthru
          _
      $region16: #{tpu_custom_call.1} parent=5 // pred_fallthru
        _
      %p116 = scmp.le.s32.totalorder 1, %s18
      %p117 = scmp.lt.s32.totalorder %s18, 5
      %p118 = pnand %p116, %p117
      %p119 = pneg %p118
      // Predicated region
      $region21: #{tpu_custom_call.1} parent=5 // pred_check
        _
      $region22: #{tpu_custom_call.1} parent=5 // pred_check_branch
        %121 = sbr.rel (%p118) target = $region24
      $region23: #{tpu_custom_call.1} parent=5 // pred_region
        %s122 = ssub.s32 %s18, 1
        %s123 = sand.u32 %s31, 1
        %s124 = scalar_lea.sflag [#allocation5], %s123
        %s125 = sand.u32 %s31, 1
        %s126 = smul.addr %s125, 144
        %s127 = scalar_lea.vmem [#allocation4], %s126
        // Predicated region
        $region25: #{tpu_custom_call.1} parent=23 // pred_check
          %p128 = pneg %p44
        $region26: #{tpu_custom_call.1} parent=23 // pred_check_branch
          %130 = sbr.rel (%p128) target = $region28
        $region27: #{tpu_custom_call.1} parent=23 // pred_region
          %131 = dma.done %s124, 2304
        $region28: #{tpu_custom_call.1} parent=23 // pred_fallthru
          _
        %s132 = sand.u32 %s31, 1
        %s133 = scalar_lea.sflag [#allocation5], %s132
        %s134 = sand.u32 %s31, 1
        %s135 = smul.addr %s134, 144
        %s136 = scalar_lea.vmem [#allocation4], %s135
        %p137 = pneg %p44
        %p138 = pneg %p41
        %p139 = pneg %p70
        %p140 = pneg %p67
        %s141 = sand.u32 %s57, 1
        %s142 = scalar_lea.sflag [#allocation6], %s141
        %s143 = sand.u32 %s57, 1
        %s144 = smul.addr %s143, 144
        %s145 = scalar_lea.vmem [#allocation7], %s144
        %s146 = smul.u32 18, %s23
        %s147 = ssub.s32 69, %s146
        %p148 = scmp.lt.s32.totalorder %s147, 18
        %s149 = scalar_select %p148, %s147, 18
        %s150 = smul.u32 128, %s149
        %s151 = smul.u32 18, %s23
        %s152 = ssub.s32 69, %s151
        %p153 = scmp.lt.s32.totalorder %s152, 18
        %s154 = scalar_select %p153, %s152, 18
        %s155 = smul.u32 128, %s154
        %v156 = vld [vmem:[%s127] sm:$0xff]
        %v157 = vld [vmem:[%s127 + $0x8] sm:$0xff]
        %v158 = vld [vmem:[%s127 + $0x10] sm:$0xff]
        %v159 = vld [vmem:[%s127 + $0x18] sm:$0xff]
        %v160 = vld [vmem:[%s127 + $0x20] sm:$0xff]
        %v161 = vld [vmem:[%s127 + $0x28] sm:$0xff]
        %v162 = vld [vmem:[%s127 + $0x30] sm:$0xff]
        %v163 = vld [vmem:[%s127 + $0x38] sm:$0xff]
        %v164 = vld [vmem:[%s127 + $0x40] sm:$0xff]
        %v165 = vld [vmem:[%s127 + $0x48] sm:$0xff]
        %v166 = vld [vmem:[%s127 + $0x50] sm:$0xff]
        %v167 = vld [vmem:[%s127 + $0x58] sm:$0xff]
        %v168 = vld [vmem:[%s127 + $0x60] sm:$0xff]
        %v169 = vld [vmem:[%s127 + $0x68] sm:$0xff]
        %v170 = vld [vmem:[%s127 + $0x70] sm:$0xff]
        %v171 = vld [vmem:[%s127 + $0x78] sm:$0xff]
        %v172 = vld [vmem:[%s127 + $0x80] sm:$0xff]
        %v173 = vld [vmem:[%s127 + $0x88] sm:$0xff]
        %s174 = sld [smem:[#allocation3]]
        %s175 = sld [smem:[#allocation3 + $0x1]]
        %s176 = sld [smem:[#allocation3 + $0x2]]
        %v177 = vstv %s174
        %v178 = vmul.f32 %v156, %v177
        %v179 = vmul.f32 %v157, %v177
        %v180 = vmul.f32 %v158, %v177
        %v181 = vmul.f32 %v159, %v177
        %v182 = vmul.f32 %v160, %v177
        %v183 = vmul.f32 %v161, %v177
        %v184 = vmul.f32 %v162, %v177
        %v185 = vmul.f32 %v163, %v177
        %v186 = vmul.f32 %v164, %v177
        %v187 = vmul.f32 %v165, %v177
        %v188 = vmul.f32 %v166, %v177
        %v189 = vmul.f32 %v167, %v177
        %v190 = vmul.f32 %v168, %v177
        %v191 = vmul.f32 %v169, %v177
        %v192 = vmul.f32 %v170, %v177
        %v193 = vmul.f32 %v171, %v177
        %v194 = vmul.f32 %v172, %v177
        %v195 = vmul.f32 %v173, %v177
        %v196 = vand.u32 2147483647, %v178
        %v197 = vand.u32 2147483647, %v179
        %v198 = vand.u32 2147483647, %v180
        %v199 = vand.u32 2147483647, %v181
        %v200 = vand.u32 2147483647, %v182
        %v201 = vand.u32 2147483647, %v183
        %v202 = vand.u32 2147483647, %v184
        %v203 = vand.u32 2147483647, %v185
        %v204 = vand.u32 2147483647, %v186
        %v205 = vand.u32 2147483647, %v187
        %v206 = vand.u32 2147483647, %v188
        %v207 = vand.u32 2147483647, %v189
        %v208 = vand.u32 2147483647, %v190
        %v209 = vand.u32 2147483647, %v191
        %v210 = vand.u32 2147483647, %v192
        %v211 = vand.u32 2147483647, %v193
        %v212 = vand.u32 2147483647, %v194
        %v213 = vand.u32 2147483647, %v195
        %vm214 = vcmp.gt.f32.partialorder %v196, 0.5
        %vm215 = vcmp.gt.f32.partialorder %v197, 0.5
        %vm216 = vcmp.gt.f32.partialorder %v198, 0.5
        %vm217 = vcmp.gt.f32.partialorder %v199, 0.5
        %vm218 = vcmp.gt.f32.partialorder %v200, 0.5
        %vm219 = vcmp.gt.f32.partialorder %v201, 0.5
        %vm220 = vcmp.gt.f32.partialorder %v202, 0.5
        %vm221 = vcmp.gt.f32.partialorder %v203, 0.5
        %vm222 = vcmp.gt.f32.partialorder %v204, 0.5
        %vm223 = vcmp.gt.f32.partialorder %v205, 0.5
        %vm224 = vcmp.gt.f32.partialorder %v206, 0.5
        %vm225 = vcmp.gt.f32.partialorder %v207, 0.5
        %vm226 = vcmp.gt.f32.partialorder %v208, 0.5
        %vm227 = vcmp.gt.f32.partialorder %v209, 0.5
        %vm228 = vcmp.gt.f32.partialorder %v210, 0.5
        %vm229 = vcmp.gt.f32.partialorder %v211, 0.5
        %vm230 = vcmp.gt.f32.partialorder %v212, 0.5
        %vm231 = vcmp.gt.f32.partialorder %v213, 0.5
        %v232 = vsel %vm214, %v178, 0.0
        %v233 = vsel %vm215, %v179, 0.0
        %v234 = vsel %vm216, %v180, 0.0
        %v235 = vsel %vm217, %v181, 0.0
        %v236 = vsel %vm218, %v182, 0.0
        %v237 = vsel %vm219, %v183, 0.0
        %v238 = vsel %vm220, %v184, 0.0
        %v239 = vsel %vm221, %v185, 0.0
        %v240 = vsel %vm222, %v186, 0.0
        %v241 = vsel %vm223, %v187, 0.0
        %v242 = vsel %vm224, %v188, 0.0
        %v243 = vsel %vm225, %v189, 0.0
        %v244 = vsel %vm226, %v190, 0.0
        %v245 = vsel %vm227, %v191, 0.0
        %v246 = vsel %vm228, %v192, 0.0
        %v247 = vsel %vm229, %v193, 0.0
        %v248 = vsel %vm230, %v194, 0.0
        %v249 = vsel %vm231, %v195, 0.0
        %v250 = vstv %s175
        %v251 = vmul.f32 %v232, %v250
        %v252 = vmul.f32 %v233, %v250
        %v253 = vmul.f32 %v234, %v250
        %v254 = vmul.f32 %v235, %v250
        %v255 = vmul.f32 %v236, %v250
        %v256 = vmul.f32 %v237, %v250
        %v257 = vmul.f32 %v238, %v250
        %v258 = vmul.f32 %v239, %v250
        %v259 = vmul.f32 %v240, %v250
        %v260 = vmul.f32 %v241, %v250
        %v261 = vmul.f32 %v242, %v250
        %v262 = vmul.f32 %v243, %v250
        %v263 = vmul.f32 %v244, %v250
        %v264 = vmul.f32 %v245, %v250
        %v265 = vmul.f32 %v246, %v250
        %v266 = vmul.f32 %v247, %v250
        %v267 = vmul.f32 %v248, %v250
        %v268 = vmul.f32 %v249, %v250
        %v269 = vand.u32 2147483647, %v251
        %v270 = vand.u32 2147483647, %v252
        %v271 = vand.u32 2147483647, %v253
        %v272 = vand.u32 2147483647, %v254
        %v273 = vand.u32 2147483647, %v255
        %v274 = vand.u32 2147483647, %v256
        %v275 = vand.u32 2147483647, %v257
        %v276 = vand.u32 2147483647, %v258
        %v277 = vand.u32 2147483647, %v259
        %v278 = vand.u32 2147483647, %v260
        %v279 = vand.u32 2147483647, %v261
        %v280 = vand.u32 2147483647, %v262
        %v281 = vand.u32 2147483647, %v263
        %v282 = vand.u32 2147483647, %v264
        %v283 = vand.u32 2147483647, %v265
        %v284 = vand.u32 2147483647, %v266
        %v285 = vand.u32 2147483647, %v267
        %v286 = vand.u32 2147483647, %v268
        %vm287 = vcmp.gt.f32.partialorder %v269, 0.5
        %vm288 = vcmp.gt.f32.partialorder %v270, 0.5
        %vm289 = vcmp.gt.f32.partialorder %v271, 0.5
        %vm290 = vcmp.gt.f32.partialorder %v272, 0.5
        %vm291 = vcmp.gt.f32.partialorder %v273, 0.5
        %vm292 = vcmp.gt.f32.partialorder %v274, 0.5
        %vm293 = vcmp.gt.f32.partialorder %v275, 0.5
        %vm294 = vcmp.gt.f32.partialorder %v276, 0.5
        %vm295 = vcmp.gt.f32.partialorder %v277, 0.5
        %vm296 = vcmp.gt.f32.partialorder %v278, 0.5
        %vm297 = vcmp.gt.f32.partialorder %v279, 0.5
        %vm298 = vcmp.gt.f32.partialorder %v280, 0.5
        %vm299 = vcmp.gt.f32.partialorder %v281, 0.5
        %vm300 = vcmp.gt.f32.partialorder %v282, 0.5
        %vm301 = vcmp.gt.f32.partialorder %v283, 0.5
        %vm302 = vcmp.gt.f32.partialorder %v284, 0.5
        %vm303 = vcmp.gt.f32.partialorder %v285, 0.5
        %vm304 = vcmp.gt.f32.partialorder %v286, 0.5
        %v305 = vsel %vm287, %v251, 0.0
        %v306 = vsel %vm288, %v252, 0.0
        %v307 = vsel %vm289, %v253, 0.0
        %v308 = vsel %vm290, %v254, 0.0
        %v309 = vsel %vm291, %v255, 0.0
        %v310 = vsel %vm292, %v256, 0.0
        %v311 = vsel %vm293, %v257, 0.0
        %v312 = vsel %vm294, %v258, 0.0
        %v313 = vsel %vm295, %v259, 0.0
        %v314 = vsel %vm296, %v260, 0.0
        %v315 = vsel %vm297, %v261, 0.0
        %v316 = vsel %vm298, %v262, 0.0
        %v317 = vsel %vm299, %v263, 0.0
        %v318 = vsel %vm300, %v264, 0.0
        %v319 = vsel %vm301, %v265, 0.0
        %v320 = vsel %vm302, %v266, 0.0
        %v321 = vsel %vm303, %v267, 0.0
        %v322 = vsel %vm304, %v268, 0.0
        %v323 = vstv %s176
        %v324 = vmul.f32 %v305, %v323
        %v325 = vmul.f32 %v306, %v323
        %v326 = vmul.f32 %v307, %v323
        %v327 = vmul.f32 %v308, %v323
        %v328 = vmul.f32 %v309, %v323
        %v329 = vmul.f32 %v310, %v323
        %v330 = vmul.f32 %v311, %v323
        %v331 = vmul.f32 %v312, %v323
        %v332 = vmul.f32 %v313, %v323
        %v333 = vmul.f32 %v314, %v323
        %v334 = vmul.f32 %v315, %v323
        %v335 = vmul.f32 %v316, %v323
        %v336 = vmul.f32 %v317, %v323
        %v337 = vmul.f32 %v318, %v323
        %v338 = vmul.f32 %v319, %v323
        %v339 = vmul.f32 %v320, %v323
        %v340 = vmul.f32 %v321, %v323
        %v341 = vmul.f32 %v322, %v323
        %v342 = vand.u32 2147483647, %v324
        %v343 = vand.u32 2147483647, %v325
        %v344 = vand.u32 2147483647, %v326
        %v345 = vand.u32 2147483647, %v327
        %v346 = vand.u32 2147483647, %v328
        %v347 = vand.u32 2147483647, %v329
        %v348 = vand.u32 2147483647, %v330
        %v349 = vand.u32 2147483647, %v331
        %v350 = vand.u32 2147483647, %v332
        %v351 = vand.u32 2147483647, %v333
        %v352 = vand.u32 2147483647, %v334
        %v353 = vand.u32 2147483647, %v335
        %v354 = vand.u32 2147483647, %v336
        %v355 = vand.u32 2147483647, %v337
        %v356 = vand.u32 2147483647, %v338
        %v357 = vand.u32 2147483647, %v339
        %v358 = vand.u32 2147483647, %v340
        %v359 = vand.u32 2147483647, %v341
        %vm360 = vcmp.gt.f32.partialorder %v342, 0.5
        %vm361 = vcmp.gt.f32.partialorder %v343, 0.5
        %vm362 = vcmp.gt.f32.partialorder %v344, 0.5
        %vm363 = vcmp.gt.f32.partialorder %v345, 0.5
        %vm364 = vcmp.gt.f32.partialorder %v346, 0.5
        %vm365 = vcmp.gt.f32.partialorder %v347, 0.5
        %vm366 = vcmp.gt.f32.partialorder %v348, 0.5
        %vm367 = vcmp.gt.f32.partialorder %v349, 0.5
        %vm368 = vcmp.gt.f32.partialorder %v350, 0.5
        %vm369 = vcmp.gt.f32.partialorder %v351, 0.5
        %vm370 = vcmp.gt.f32.partialorder %v352, 0.5
        %vm371 = vcmp.gt.f32.partialorder %v353, 0.5
        %vm372 = vcmp.gt.f32.partialorder %v354, 0.5
        %vm373 = vcmp.gt.f32.partialorder %v355, 0.5
        %vm374 = vcmp.gt.f32.partialorder %v356, 0.5
        %vm375 = vcmp.gt.f32.partialorder %v357, 0.5
        %vm376 = vcmp.gt.f32.partialorder %v358, 0.5
        %vm377 = vcmp.gt.f32.partialorder %v359, 0.5
        %v378 = vsel %vm360, %v324, 0.0
        %v379 = vsel %vm361, %v325, 0.0
        %v380 = vsel %vm362, %v326, 0.0
        %v381 = vsel %vm363, %v327, 0.0
        %v382 = vsel %vm364, %v328, 0.0
        %v383 = vsel %vm365, %v329, 0.0
        %v384 = vsel %vm366, %v330, 0.0
        %v385 = vsel %vm367, %v331, 0.0
        %v386 = vsel %vm368, %v332, 0.0
        %v387 = vsel %vm369, %v333, 0.0
        %v388 = vsel %vm370, %v334, 0.0
        %v389 = vsel %vm371, %v335, 0.0
        %v390 = vsel %vm372, %v336, 0.0
        %v391 = vsel %vm373, %v337, 0.0
        %v392 = vsel %vm374, %v338, 0.0
        %v393 = vsel %vm375, %v339, 0.0
        %v394 = vsel %vm376, %v340, 0.0
        %v395 = vsel %vm377, %v341, 0.0
        %396 = vst [vmem:[%s145] sm:$0xff] %v378
        %397 = vst [vmem:[%s145 + $0x8] sm:$0xff] %v379
        %398 = vst [vmem:[%s145 + $0x10] sm:$0xff] %v380
        %399 = vst [vmem:[%s145 + $0x18] sm:$0xff] %v381
        %400 = vst [vmem:[%s145 + $0x20] sm:$0xff] %v382
        %401 = vst [vmem:[%s145 + $0x28] sm:$0xff] %v383
        %402 = vst [vmem:[%s145 + $0x30] sm:$0xff] %v384
        %403 = vst [vmem:[%s145 + $0x38] sm:$0xff] %v385
        %404 = vst [vmem:[%s145 + $0x40] sm:$0xff] %v386
        %405 = vst [vmem:[%s145 + $0x48] sm:$0xff] %v387
        %406 = vst [vmem:[%s145 + $0x50] sm:$0xff] %v388
        %407 = vst [vmem:[%s145 + $0x58] sm:$0xff] %v389
        %408 = vst [vmem:[%s145 + $0x60] sm:$0xff] %v390
        %409 = vst [vmem:[%s145 + $0x68] sm:$0xff] %v391
        %410 = vst [vmem:[%s145 + $0x70] sm:$0xff] %v392
        %411 = vst [vmem:[%s145 + $0x78] sm:$0xff] %v393
        %412 = vst [vmem:[%s145 + $0x80] sm:$0xff] %v394
        %413 = vst [vmem:[%s145 + $0x88] sm:$0xff] %v395
        %s414 = sand.u32 %s57, 1
        %s415 = scalar_lea.sflag [#allocation6], %s414
        %s416 = sand.u32 %s57, 1
        %s417 = smul.addr %s416, 144
        %s418 = scalar_lea.vmem [#allocation7], %s417
        // Predicated region
        $region29: #{tpu_custom_call.1} parent=23 // pred_check
          %p419 = pneg %p67
        $region30: #{tpu_custom_call.1} parent=23 // pred_check_branch
          %421 = sbr.rel (%p419) target = $region32
        $region31: #{tpu_custom_call.1} parent=23 // pred_region
          %s422 = smul.u32 18, %s23
          %s423 = ssub.s32 69, %s422
          %p424 = scmp.lt.s32.totalorder %s423, 18
          %s425 = scalar_select %p424, %s423, 18
          %s426 = smul.u32 128, %s425
          %s428 = ssub.s32 2304, %s426
          %429 = vsyncadd %s415, %s428
          %p430 = scmp.ne.s32.totalorder 0, %s426
          %s431 = smul.addr %s422, 128
          %s432 = scalar_lea.hbm %s2, %s431
          %s433 = smul.u32 8, %s425
          %s434 = sshll.u32 %s418, 4
          %s435 = int_to_ptr.vmem [resolvable:$true] %s434
          %s436 = sshll.u32 %s433, 4
          %440 = dma.vmem_to_hbm [thread:$0]  (%p430), %s435, %s436, %s432, %s415, 128, 128, 8
        $region32: #{tpu_custom_call.1} parent=23 // pred_fallthru
          _
      $region24: #{tpu_custom_call.1} parent=5 // pred_fallthru
        _
      %p441 = scmp.le.s32.totalorder 2, %s18
      // Predicated region
      $region33: #{tpu_custom_call.1} parent=5 // pred_check
        %p442 = pneg %p441
      $region34: #{tpu_custom_call.1} parent=5 // pred_check_branch
        %444 = sbr.rel (%p442) target = $region36
      $region35: #{tpu_custom_call.1} parent=5 // pred_region
        %s445 = ssub.s32 %s18, 2
        // Predicated region
        $region37: #{tpu_custom_call.1} parent=35 // pred_check
          %p446 = pneg %p73
        $region38: #{tpu_custom_call.1} parent=35 // pred_check_branch
          %448 = sbr.rel (%p446) target = $region40
        $region39: #{tpu_custom_call.1} parent=35 // pred_region
          %s449 = sand.u32 %s58, 1
          %s450 = scalar_lea.sflag [#allocation6], %s449
          %s451 = sand.u32 %s58, 1
          %s452 = smul.addr %s451, 144
          %s453 = scalar_lea.vmem [#allocation7], %s452
          %454 = dma.done %s450, 2304
        $region40: #{tpu_custom_call.1} parent=35 // pred_fallthru
          _
      $region36: #{tpu_custom_call.1} parent=5 // pred_fallthru
        _
    $region6: #{tpu_custom_call.1} parent=1 // loop_footer
      %s22 = sadd.s32 1, %s18
    $region7: #{tpu_custom_call.1} parent=1 // loop_footer_branch
      %17 = sbr.rel target = $region3
    $region8: #{tpu_custom_call.1} parent=1 // loop_exit
      _
    %455 = vsyncpa [#allocation5], 1
    %s456 = scalar_lea.sflag [#allocation5], 1
    %457 = vsyncpa %s456, 1
    %458 = vsyncpa [#allocation6], 1
    %s459 = scalar_lea.sflag [#allocation6], 1
    %460 = vsyncpa %s459, 1

</llo_original>
